<compile_context>
chip_gen: v6e
topology: v6e:2x2x1
jax: 0.10.0
libtpu: 0.0.40
codegen_flags: <defaults>
</compile_context>

<pallas_src>
import math
import jax
import jax.numpy as jnp
from jax import lax
from jax.experimental import pallas as pl
from jax.experimental.pallas import tpu as pltpu


def _round_up(x, m):
    return ((x + m - 1) // m) * m


def _gelu_exact(x):
    # exact GELU (erf formulation), same as torch.nn.GELU(approximate='none')
    # TODO(synk): tanh-approx GELU would ride the EUP slot; only worth it if the
    # VALU becomes the saturating unit after the bf16/unpadded-output changes.
    return 0.5 * x * (1.0 + lax.erf(x * (1.0 / math.sqrt(2.0))))


def _mlp_cond_kernel(x_ref, xc_ref, t_ref, emb_ref,
                     w1a_ref, w1b_ref, b1_ref,
                     w2_ref, b2_ref,
                     w3_ref, b3_ref,
                     o_ref):
    """Whole forward pass for one batch tile.

    x_ref   : [TB, input_dim]          raw input (f32)
    xc_ref  : [TB, cond_dim]           conditioning input (f32)
    t_ref   : [TB, 1] int32            timestep indices
    emb_ref : [n_steps_p, h0] f32      resident embedding table
    w1a_ref : [input_dim, h0]  (W1 rows for x)        } compute dtype (bf16/f32)
    w1b_ref : [cond_dim,  h0]  (W1 rows for x_cond)   }
    w2_ref  : [h0, h1],  w3_ref: [h1, input_dim]      }
    b*_ref  : [1, out] f32 bias rows
    o_ref   : [TB, input_dim]
    """
    cdt = w1a_ref.dtype                      # MXU operand dtype (bf16 or f32)

    x = x_ref[...].astype(cdt)
    xc = xc_ref[...].astype(cdt)

    # Fused "concat + Linear": x @ W1[:input_dim] + x_cond @ W1[input_dim:] + b1
    h = (jnp.dot(x, w1a_ref[...], preferred_element_type=jnp.float32)
         + jnp.dot(xc, w1b_ref[...], preferred_element_type=jnp.float32)
         + b1_ref[...])

    # In-kernel embedding gather: one_hot(t) @ emb_table (exact, f32 table).
    # NOTE: any t outside [0, n_steps) yields a zero embedding (nn.Embedding
    # would raise); documented precondition.
    tb = t_ref[...]                                                  # [TB, 1] int32
    n_steps_p = emb_ref.shape[0]
    steps = lax.broadcasted_iota(jnp.int32, (tb.shape[0], n_steps_p), 1)
    onehot = (tb == steps).astype(jnp.float32)                       # [TB, n_steps_p]
    emb = jnp.dot(onehot, emb_ref[...], preferred_element_type=jnp.float32)

    # input layer: Linear -> (Dropout = identity in eval) -> GELU, then + emb(t)
    h = _gelu_exact(h) + emb

    # hidden layer 0: Linear -> (Dropout) -> GELU
    h = (jnp.dot(h.astype(cdt), w2_ref[...], preferred_element_type=jnp.float32)
         + b2_ref[...])
    h = _gelu_exact(h)

    # output layer: Linear (unpadded, contiguous (tile_b, input_dim) writeback)
    o_ref[...] = (jnp.dot(h.astype(cdt), w3_ref[...],
                          preferred_element_type=jnp.float32)
                  + b3_ref[...]).astype(o_ref.dtype)


def score_model_mlp_cond_forward(x, x_cond, t, params, *, tile_b=1024,
                                 use_bf16=True):
    """Pallas forward for score_model_mlp_cond (hidden=[128,128], eval mode)."""
    B, input_dim = x.shape
    cond_dim = x_cond.shape[1]
    w1, b1 = params["w1"], params["b1"]
    w2, b2 = params["w2"], params["b2"]
    w3, b3 = params["w3"], params["b3"]
    emb_table = params["emb"]

    h0 = w1.shape[1]
    h1 = w2.shape[1]
    n_steps = emb_table.shape[0]

    # ---- grid-invariant wrapper-side prep (done once, tiny) -----------------
    cdt = jnp.bfloat16 if use_bf16 else jnp.float32
    # split W1 so the concat can be fused into two MXU dots; cast once to bf16
    w1a = w1[:input_dim].astype(cdt)                       # [input_dim, h0]
    w1b = w1[input_dim:].astype(cdt)                       # [cond_dim,  h0]
    w2c = w2.astype(cdt)                                   # [h0, h1]
    w3c = w3.astype(cdt)                                   # [h1, input_dim] (unpadded)

    # biases / embedding stay f32 (elementwise math is f32; emb gather is exact)
    b1_2d = b1.reshape(1, h0)
    b2_2d = b2.reshape(1, h1)
    b3_2d = b3.reshape(1, input_dim)

    # pad the embedding table rows to a sublane multiple (harmless zeros)
    n_steps_p = _round_up(n_steps, 8)
    if n_steps_p != n_steps:
        emb_p = jnp.zeros((n_steps_p, h0), emb_table.dtype).at[:n_steps].set(emb_table)
    else:
        emb_p = emb_table

    # ---- batch tiling -------------------------------------------------------
    # Fixed tile (multiple of 8 f32 sublanes).  VMEM budget note: x, x_cond, t
    # and the output each lane-pad to full 128-lane tiles in VMEM (~512 B/row
    # per buffer), so per-step double-buffered activation VMEM ~ 4 KiB * tile_b;
    # tile_b <= 2048 keeps that ~8 MiB, inside the 32 MiB scoped limit below.
    tile_b = max(8, min(int(tile_b), 2048))
    tile_b = _round_up(tile_b, 8)
    tile_b = min(tile_b, _round_up(B, 8))
    B_pad = _round_up(B, tile_b)
    # Guarantee >= 2 grid steps when there is enough batch to split, so the
    # "parallel" axis can shard across both TensorCores on v7x.
    if B_pad // tile_b < 2 and B > 8:
        tile_b = _round_up(pl.cdiv(B, 2), 8)
        B_pad = _round_up(B, tile_b)
    grid = (B_pad // tile_b,)

    if B_pad != B:
        x_p = jnp.pad(x, ((0, B_pad - B), (0, 0)))
        xc_p = jnp.pad(x_cond, ((0, B_pad - B), (0, 0)))
        t_p = jnp.pad(t, (0, B_pad - B))                   # pad index 0 is valid
    else:
        x_p, xc_p, t_p = x, x_cond, t
    t2d = t_p.reshape(B_pad, 1).astype(jnp.int32)
    # TODO(synk): callers that can hand us a packed [B, input_dim+cond_dim+1]
    # array would save two DMA streams; not packed here to avoid an extra HBM pass.

    # ---- cost estimate (kernel is HBM/overhead-bound, helps XLA scheduling) --
    wbytes = 2 if use_bf16 else 4
    flops = 2 * B_pad * (input_dim * h0 + cond_dim * h0 + n_steps_p * h0
                         + h0 * h1 + h1 * input_dim)
    transcendentals = B_pad * (h0 + h1)                    # two erf-GELU layers
    bytes_accessed = (4 * B_pad * (input_dim + cond_dim + 1 + input_dim)
                      + 4 * n_steps_p * h0
                      + wbytes * (input_dim * h0 + cond_dim * h0
                                  + h0 * h1 + h1 * input_dim)
                      + 4 * (h0 + h1 + input_dim))
    cost = pl.CostEstimate(flops=int(flops),
                           transcendentals=int(transcendentals),
                           bytes_accessed=int(bytes_accessed))

    # NOTE: weight/bias/table BlockSpecs use a constant (0, 0) index_map, which
    # suppresses re-DMA across grid steps (they stay resident in VMEM).
    out = pl.pallas_call(
        _mlp_cond_kernel,
        out_shape=jax.ShapeDtypeStruct((B_pad, input_dim), x.dtype),
        grid_spec=pltpu.PrefetchScalarGridSpec(
            num_scalar_prefetch=0,
            grid=grid,
            in_specs=[
                pl.BlockSpec((tile_b, input_dim), lambda i: (i, 0)),   # x (tiled)
                pl.BlockSpec((tile_b, cond_dim), lambda i: (i, 0)),    # x_cond
                pl.BlockSpec((tile_b, 1), lambda i: (i, 0)),           # t indices
                pl.BlockSpec((n_steps_p, h0), lambda i: (0, 0)),       # emb table
                pl.BlockSpec((input_dim, h0), lambda i: (0, 0)),       # w1a
                pl.BlockSpec((cond_dim, h0), lambda i: (0, 0)),        # w1b
                pl.BlockSpec((1, h0), lambda i: (0, 0)),               # b1
                pl.BlockSpec((h0, h1), lambda i: (0, 0)),              # w2
                pl.BlockSpec((1, h1), lambda i: (0, 0)),               # b2
                pl.BlockSpec((h1, input_dim), lambda i: (0, 0)),       # w3 (unpadded)
                pl.BlockSpec((1, input_dim), lambda i: (0, 0)),        # b3 (unpadded)
            ],
            out_specs=pl.BlockSpec((tile_b, input_dim), lambda i: (i, 0)),
        ),
        compiler_params=pltpu.CompilerParams(
            dimension_semantics=("parallel",),
            vmem_limit_bytes=32 * 1024 * 1024),
        cost_estimate=cost,
    )(x_p, xc_p, t2d, emb_p, w1a, w1b, b1_2d, w2c, b2_2d, w3c, b3_2d)

    return out[:B, :]


def init_params(key, input_dim, cond_dim, n_steps, hidden=(128, 128)):
    """Deterministic synthetic parameters (shapes match the PyTorch module)."""
    ks = jax.random.split(key, 8)
    d_in = input_dim + cond_dim
    h0, h1 = hidden

    def lin(kw, kb, fan_in, fan_out):
        bound = 1.0 / math.sqrt(fan_in)
        w = jax.random.uniform(kw, (fan_in, fan_out), jnp.float32, -bound, bound)
        b = jax.random.uniform(kb, (fan_out,), jnp.float32, -bound, bound)
        return w, b

    w1, b1 = lin(ks[0], ks[1], d_in, h0)
    w2, b2 = lin(ks[2], ks[3], h0, h1)
    w3, b3 = lin(ks[4], ks[5], h1, input_dim)
    emb = jax.random.normal(ks[6], (n_steps, h0), jnp.float32)  # nn.Embedding ~ N(0,1)
    return {"w1": w1, "b1": b1, "w2": w2, "b2": b2,
            "w3": w3, "b3": b3, "emb": emb}


def _reference_forward(x, x_cond, t, params):
    """Pure-JAX f32 reference (eval-mode dropout = identity)."""
    xc = jnp.concatenate([x, x_cond], axis=1)
    h = xc @ params["w1"] + params["b1"]
    h = jax.nn.gelu(h, approximate=False) + params["emb"][t]
    h = h @ params["w2"] + params["b2"]
    h = jax.nn.gelu(h, approximate=False)
    return h @ params["w3"] + params["b3"]


if __name__ == "__main__":
    # TODO(synk): Dropout(0.2) is implemented as identity (eval mode); train-mode
    # stochastic dropout would need pltpu.prng_* inside the kernel.
    key = jax.random.PRNGKey(0)
    k_x, k_c, k_t, k_p = jax.random.split(key, 4)

    input_dim, cond_dim, n_steps = 16, 8, 10
    hidden = (128, 128)
    params = init_params(k_p, input_dim, cond_dim, n_steps, hidden)

    # small smoke test (single grid step) -- full-f32 path, tight tolerance
    B = 8
    x = jax.random.normal(k_x, (B, input_dim), jnp.float32)
    x_cond = jax.random.normal(k_c, (B, cond_dim), jnp.float32)
    t = jax.random.randint(k_t, (B,), 0, n_steps)

    ref = _reference_forward(x, x_cond, t, params)

    out_f32 = score_model_mlp_cond_forward(x, x_cond, t, params, use_bf16=False)
    out_f32 = jax.block_until_ready(out_f32)
    assert out_f32.shape == (B, input_dim)
    assert jnp.allclose(out_f32, ref, atol=1e-4, rtol=1e-4), "f32 path mismatch"

    # default bf16-matmul path, relaxed tolerance vs f32 reference
    out_bf16 = score_model_mlp_cond_forward(x, x_cond, t, params)
    out_bf16 = jax.block_until_ready(out_bf16)
    assert out_bf16.shape == (B, input_dim)
    assert jnp.allclose(out_bf16, ref, atol=3e-2, rtol=3e-2), "bf16 path mismatch"

    # ragged-batch / multi-tile test (exercises padding, >=2-step grid, pipelining)
    B2 = 300
    k_x2, k_c2, k_t2 = jax.random.split(jax.random.PRNGKey(1), 3)
    x2 = jax.random.normal(k_x2, (B2, input_dim), jnp.float32)
    xc2 = jax.random.normal(k_c2, (B2, cond_dim), jnp.float32)
    t2 = jax.random.randint(k_t2, (B2,), 0, n_steps)
    ref2 = _reference_forward(x2, xc2, t2, params)

    # default tile -> auto-split into 2 grid steps (v7x dual-TC sharding path)
    out2 = score_model_mlp_cond_forward(x2, xc2, t2, params)
    out2 = jax.block_until_ready(out2)
    assert out2.shape == (B2, input_dim)
    assert jnp.allclose(out2, ref2, atol=3e-2, rtol=3e-2), "mismatch (2-step grid)"

    # explicit small tile -> many grid steps
    out3 = score_model_mlp_cond_forward(x2, xc2, t2, params, tile_b=64)
    out3 = jax.block_until_ready(out3)
    assert out3.shape == (B2, input_dim)
    assert jnp.allclose(out3, ref2, atol=3e-2, rtol=3e-2), "mismatch (multi-tile)"

    print("KERNEL_OK")
</pallas_src>

<mosaic_0001>
module attributes {stable_mosaic.version = 11 : i64} {
  func.func @_mlp_cond_kernel(%arg0: i32, %arg1: memref<8x16xf32, #tpu.memory_space<vmem>>, %arg2: memref<8x8xf32, #tpu.memory_space<vmem>>, %arg3: memref<8x1xi32, #tpu.memory_space<vmem>>, %arg4: memref<16x128xf32, #tpu.memory_space<vmem>>, %arg5: memref<16x128xf32, #tpu.memory_space<vmem>>, %arg6: memref<8x128xf32, #tpu.memory_space<vmem>>, %arg7: memref<1x128xf32, #tpu.memory_space<vmem>>, %arg8: memref<128x128xf32, #tpu.memory_space<vmem>>, %arg9: memref<1x128xf32, #tpu.memory_space<vmem>>, %arg10: memref<128x16xf32, #tpu.memory_space<vmem>>, %arg11: memref<1x16xf32, #tpu.memory_space<vmem>>, %arg12: memref<8x16xf32, #tpu.memory_space<vmem>>) attributes {dimension_semantics = [#tpu.dimension_semantics<parallel>], iteration_bounds = array<i64: 1>, scalar_prefetch = 0 : i64, scratch_operands = 0 : i64, tpu.core_type = #tpu.core_type<tc>, window_params = [{transform_indices = @transform_0, window_bounds = array<i64: 8, 16>}, {transform_indices = @transform_1, window_bounds = array<i64: 8, 8>}, {transform_indices = @transform_2, window_bounds = array<i64: 8, 1>}, {pipeline_mode = #tpu.pipeline_mode<synchronous>, transform_indices = @transform_3, window_bounds = array<i64: 16, 128>}, {pipeline_mode = #tpu.pipeline_mode<synchronous>, transform_indices = @transform_4, window_bounds = array<i64: 16, 128>}, {pipeline_mode = #tpu.pipeline_mode<synchronous>, transform_indices = @transform_5, window_bounds = array<i64: 8, 128>}, {pipeline_mode = #tpu.pipeline_mode<synchronous>, transform_indices = @transform_6, window_bounds = array<i64: 1, 128>}, {pipeline_mode = #tpu.pipeline_mode<synchronous>, transform_indices = @transform_7, window_bounds = array<i64: 128, 128>}, {pipeline_mode = #tpu.pipeline_mode<synchronous>, transform_indices = @transform_8, window_bounds = array<i64: 1, 128>}, {pipeline_mode = #tpu.pipeline_mode<synchronous>, transform_indices = @transform_9, window_bounds = array<i64: 128, 16>}, {pipeline_mode = #tpu.pipeline_mode<synchronous>, transform_indices = @transform_10, window_bounds = array<i64: 1, 16>}, {transform_indices = @transform_11, window_bounds = array<i64: 8, 16>}]} {
    %c0 = arith.constant 0 : index
    %c0_0 = arith.constant 0 : index
    %0 = vector.load %arg1[%c0, %c0_0] : memref<8x16xf32, #tpu.memory_space<vmem>>, vector<8x16xf32>
    %c0_1 = arith.constant 0 : index
    %c0_2 = arith.constant 0 : index
    %1 = vector.load %arg2[%c0_1, %c0_2] : memref<8x8xf32, #tpu.memory_space<vmem>>, vector<8x8xf32>
    %c0_3 = arith.constant 0 : index
    %c0_4 = arith.constant 0 : index
    %2 = vector.load %arg5[%c0_3, %c0_4] : memref<16x128xf32, #tpu.memory_space<vmem>>, vector<16x128xf32>
    %cst = arith.constant dense<0.000000e+00> : vector<8x128xf32>
    %3 = tpu.matmul %0, %2, %cst {dimension_numbers = #tpu.dot_dimension_numbers<[1], [0], [0], [1], [0, 0, 1, 1], [], []>} : vector<8x16xf32>, vector<16x128xf32>, vector<8x128xf32> -> vector<8x128xf32>
    %c0_5 = arith.constant 0 : index
    %c0_6 = arith.constant 0 : index
    %4 = vector.load %arg6[%c0_5, %c0_6] : memref<8x128xf32, #tpu.memory_space<vmem>>, vector<8x128xf32>
    %cst_7 = arith.constant dense<0.000000e+00> : vector<8x128xf32>
    %5 = tpu.matmul %1, %4, %cst_7 {dimension_numbers = #tpu.dot_dimension_numbers<[1], [0], [0], [1], [0, 0, 1, 1], [], []>} : vector<8x8xf32>, vector<8x128xf32>, vector<8x128xf32> -> vector<8x128xf32>
    %6 = arith.addf %3, %5 : vector<8x128xf32>
    %c0_8 = arith.constant 0 : index
    %c0_9 = arith.constant 0 : index
    %7 = vector.load %arg7[%c0_8, %c0_9] : memref<1x128xf32, #tpu.memory_space<vmem>>, vector<1x128xf32>
    %8 = vector.broadcast %7 : vector<1x128xf32> to vector<8x128xf32>
    %9 = arith.addf %6, %8 : vector<8x128xf32>
    %c0_10 = arith.constant 0 : index
    %c0_11 = arith.constant 0 : index
    %10 = vector.load %arg3[%c0_10, %c0_11] : memref<8x1xi32, #tpu.memory_space<vmem>>, vector<8x1xi32>
    %11 = tpu.iota {dimensions = array<i32: 1>} : vector<8x16xi32>
    %12 = vector.broadcast %10 : vector<8x1xi32> to vector<8x16xi32>
    %13 = arith.cmpi eq, %12, %11 : vector<8x16xi32>
    %14 = arith.extui %13 : vector<8x16xi1> to vector<8x16xi32>
    %15 = arith.sitofp %14 : vector<8x16xi32> to vector<8x16xf32>
    %c0_12 = arith.constant 0 : index
    %c0_13 = arith.constant 0 : index
    %16 = vector.load %arg4[%c0_12, %c0_13] : memref<16x128xf32, #tpu.memory_space<vmem>>, vector<16x128xf32>
    %cst_14 = arith.constant dense<0.000000e+00> : vector<8x128xf32>
    %17 = tpu.matmul %15, %16, %cst_14 {dimension_numbers = #tpu.dot_dimension_numbers<[1], [0], [0], [1], [0, 0, 1, 1], [], []>} : vector<8x16xf32>, vector<16x128xf32>, vector<8x128xf32> -> vector<8x128xf32>
    %cst_15 = arith.constant 5.000000e-01 : f32
    %18 = vector.broadcast %cst_15 : f32 to vector<8x128xf32>
    %19 = arith.mulf %18, %9 : vector<8x128xf32>
    %cst_16 = arith.constant 0.707106769 : f32
    %20 = vector.broadcast %cst_16 : f32 to vector<8x128xf32>
    %21 = arith.mulf %9, %20 : vector<8x128xf32>
    %22 = math.erf %21 : vector<8x128xf32>
    %cst_17 = arith.constant 1.000000e+00 : f32
    %23 = vector.broadcast %cst_17 : f32 to vector<8x128xf32>
    %24 = arith.addf %23, %22 : vector<8x128xf32>
    %25 = arith.mulf %19, %24 : vector<8x128xf32>
    %26 = arith.addf %25, %17 : vector<8x128xf32>
    %c0_18 = arith.constant 0 : index
    %c0_19 = arith.constant 0 : index
    %27 = vector.load %arg8[%c0_18, %c0_19] : memref<128x128xf32, #tpu.memory_space<vmem>>, vector<128x128xf32>
    %cst_20 = arith.constant dense<0.000000e+00> : vector<8x128xf32>
    %28 = tpu.matmul %26, %27, %cst_20 {dimension_numbers = #tpu.dot_dimension_numbers<[1], [0], [0], [1], [0, 0, 1, 1], [], []>} : vector<8x128xf32>, vector<128x128xf32>, vector<8x128xf32> -> vector<8x128xf32>
    %c0_21 = arith.constant 0 : index
    %c0_22 = arith.constant 0 : index
    %29 = vector.load %arg9[%c0_21, %c0_22] : memref<1x128xf32, #tpu.memory_space<vmem>>, vector<1x128xf32>
    %30 = vector.broadcast %29 : vector<1x128xf32> to vector<8x128xf32>
    %31 = arith.addf %28, %30 : vector<8x128xf32>
    %cst_23 = arith.constant 5.000000e-01 : f32
    %32 = vector.broadcast %cst_23 : f32 to vector<8x128xf32>
    %33 = arith.mulf %32, %31 : vector<8x128xf32>
    %cst_24 = arith.constant 0.707106769 : f32
    %34 = vector.broadcast %cst_24 : f32 to vector<8x128xf32>
    %35 = arith.mulf %31, %34 : vector<8x128xf32>
    %36 = math.erf %35 : vector<8x128xf32>
    %cst_25 = arith.constant 1.000000e+00 : f32
    %37 = vector.broadcast %cst_25 : f32 to vector<8x128xf32>
    %38 = arith.addf %37, %36 : vector<8x128xf32>
    %39 = arith.mulf %33, %38 : vector<8x128xf32>
    %c0_26 = arith.constant 0 : index
    %c0_27 = arith.constant 0 : index
    %40 = vector.load %arg10[%c0_26, %c0_27] : memref<128x16xf32, #tpu.memory_space<vmem>>, vector<128x16xf32>
    %cst_28 = arith.constant dense<0.000000e+00> : vector<8x16xf32>
    %41 = tpu.matmul %39, %40, %cst_28 {dimension_numbers = #tpu.dot_dimension_numbers<[1], [0], [0], [1], [0, 0, 1, 1], [], []>} : vector<8x128xf32>, vector<128x16xf32>, vector<8x16xf32> -> vector<8x16xf32>
    %c0_29 = arith.constant 0 : index
    %c0_30 = arith.constant 0 : index
    %42 = vector.load %arg11[%c0_29, %c0_30] : memref<1x16xf32, #tpu.memory_space<vmem>>, vector<1x16xf32>
    %43 = vector.broadcast %42 : vector<1x16xf32> to vector<8x16xf32>
    %44 = arith.addf %41, %43 : vector<8x16xf32>
    %c0_31 = arith.constant 0 : index
    %c0_32 = arith.constant 0 : index
    %45 = vector.load %arg12[%c0_31, %c0_32] : memref<8x16xf32, #tpu.memory_space<vmem>>, vector<8x16xf32>
    tpu.vector_store %arg12[%c0_31, %c0_32], %44 {strides = array<i32>} : memref<8x16xf32, #tpu.memory_space<vmem>>, vector<8x16xf32>,
    return
  }
  func.func @transform_0(%arg0: i32) -> (i32, i32) {
    %c0_i32 = arith.constant 0 : i32
    %c0_i32_0 = arith.constant 0 : i32
    return %arg0, %c0_i32 : i32, i32
  }
  func.func @transform_1(%arg0: i32) -> (i32, i32) {
    %c0_i32 = arith.constant 0 : i32
    %c0_i32_0 = arith.constant 0 : i32
    return %arg0, %c0_i32 : i32, i32
  }
  func.func @transform_2(%arg0: i32) -> (i32, i32) {
    %c0_i32 = arith.constant 0 : i32
    %c0_i32_0 = arith.constant 0 : i32
    return %arg0, %c0_i32 : i32, i32
  }
  func.func @transform_3(%arg0: i32) -> (i32, i32) {
    %c0_i32 = arith.constant 0 : i32
    %c0_i32_0 = arith.constant 0 : i32
    %c0_i32_1 = arith.constant 0 : i32
    return %c0_i32, %c0_i32_0 : i32, i32
  }
  func.func @transform_4(%arg0: i32) -> (i32, i32) {
    %c0_i32 = arith.constant 0 : i32
    %c0_i32_0 = arith.constant 0 : i32
    %c0_i32_1 = arith.constant 0 : i32
    return %c0_i32, %c0_i32_0 : i32, i32
  }
  func.func @transform_5(%arg0: i32) -> (i32, i32) {
    %c0_i32 = arith.constant 0 : i32
    %c0_i32_0 = arith.constant 0 : i32
    %c0_i32_1 = arith.constant 0 : i32
    return %c0_i32, %c0_i32_0 : i32, i32
  }
  func.func @transform_6(%arg0: i32) -> (i32, i32) {
    %c0_i32 = arith.constant 0 : i32
    %c0_i32_0 = arith.constant 0 : i32
    %c0_i32_1 = arith.constant 0 : i32
    return %c0_i32, %c0_i32_0 : i32, i32
  }
  func.func @transform_7(%arg0: i32) -> (i32, i32) {
    %c0_i32 = arith.constant 0 : i32
    %c0_i32_0 = arith.constant 0 : i32
    %c0_i32_1 = arith.constant 0 : i32
    return %c0_i32, %c0_i32_0 : i32, i32
  }
  func.func @transform_8(%arg0: i32) -> (i32, i32) {
    %c0_i32 = arith.constant 0 : i32
    %c0_i32_0 = arith.constant 0 : i32
    %c0_i32_1 = arith.constant 0 : i32
    return %c0_i32, %c0_i32_0 : i32, i32
  }
  func.func @transform_9(%arg0: i32) -> (i32, i32) {
    %c0_i32 = arith.constant 0 : i32
    %c0_i32_0 = arith.constant 0 : i32
    %c0_i32_1 = arith.constant 0 : i32
    return %c0_i32, %c0_i32_0 : i32, i32
  }
  func.func @transform_10(%arg0: i32) -> (i32, i32) {
    %c0_i32 = arith.constant 0 : i32
    %c0_i32_0 = arith.constant 0 : i32
    %c0_i32_1 = arith.constant 0 : i32
    return %c0_i32, %c0_i32_0 : i32, i32
  }
  func.func @transform_11(%arg0: i32) -> (i32, i32) {
    %c0_i32 = arith.constant 0 : i32
    %c0_i32_0 = arith.constant 0 : i32
    return %arg0, %c0_i32 : i32, i32
  }
}

</mosaic_0001>

<llo_original>
// kernel: tpu_custom_call.1
$region0: #{tpu_custom_call.1}
  #allocation0 [shape = 'u32[]', space=smem, size = 0x4, offset = 0x4, fixed_abs, tag = 'smem constant byte address 0x4 - core index']
  #allocation1 [shape = 'u32[144,128]{1,0:T(1,128)}', space=vmem, size = 0x12000, scoped, tag = 'internal scratch']
  %s0 = inlined_call_operand.vmem [shape: f32[8,16], index: 0, kind: input, shape index: {}]
  %s1 = inlined_call_operand.hbm [shape: f32[8,8], index: 1, kind: input, shape index: {}]
  %s2 = inlined_call_operand.vmem [shape: s32[8,1], index: 2, kind: input, shape index: {}]
  %s3 = inlined_call_operand.vmem [shape: f32[16,128], index: 3, kind: input, shape index: {}]
  %s4 = inlined_call_operand.hbm [shape: f32[16,128], index: 4, kind: input, shape index: {}]
  %s5 = inlined_call_operand.hbm [shape: f32[8,128], index: 5, kind: input, shape index: {}]
  %s6 = inlined_call_operand.vmem [shape: f32[1,128], index: 6, kind: input, shape index: {}]
  %s7 = inlined_call_operand.vmem [shape: f32[128,128], index: 7, kind: input, shape index: {}]
  %s8 = inlined_call_operand.hbm [shape: f32[1,128], index: 8, kind: input, shape index: {}]
  %s9 = inlined_call_operand.vmem [shape: f32[128,16], index: 9, kind: input, shape index: {}]
  %s10 = inlined_call_operand.vmem [shape: f32[1,16], index: 10, kind: input, shape index: {}]
  %s11 = inlined_call_operand.hbm [shape: f32[8,16], index: 11, kind: output, shape index: {}]
  %s12 = sld [smem:[#allocation0]]
  $region70: #{tpu_custom_call.1} parent=0
    _
  %s14 = ssub.s32 1, %s12
  %s15 = scalar_select 0, %s14, %s12
  $region1: #{tpu_custom_call.1} parent=0
    #allocation2 [shape = 'u8[4096]{0}', space=vmem, size = 0x1000, scoped, tag = 'input window, operand 1, single buffered']
    #allocation3 [shape = 's32[1]{0}', space=sflag, size = 0x4, scoped, tag = 'scoped memory for tpu_custom_call.1']
    #allocation4 [shape = 's32[1]{0}', space=sflag, size = 0x4, scoped, tag = 'scoped memory for tpu_custom_call.1']
    #allocation5 [shape = 'u8[8192]{0}', space=vmem, size = 0x2000, scoped, tag = 'input window, operand 4, single buffered']
    #allocation6 [shape = 's32[1]{0}', space=sflag, size = 0x4, scoped, tag = 'scoped memory for tpu_custom_call.1']
    #allocation7 [shape = 'u8[4096]{0}', space=vmem, size = 0x1000, scoped, tag = 'input window, operand 5, single buffered']
    #allocation8 [shape = 'u8[512]{0}', space=vmem, size = 0x400, scoped, tag = 'input window, operand 8, single buffered']
    #allocation9 [shape = 's32[1]{0}', space=sflag, size = 0x4, scoped, tag = 'scoped memory for tpu_custom_call.1']
    #allocation10 [shape = 'u8[4096]{0}', space=vmem, size = 0x1000, scoped, tag = 'output window, operand 0, single buffered']
    %16 = vsyncpa [#allocation3], 0
    %17 = vsyncpa [#allocation6], 0
    %18 = vsyncpa [#allocation9], 0
    %19 = vsyncpa [#allocation4], 0
    // Predicated region
    $region2: #{tpu_custom_call.1} parent=1 // pred_check
      _
    $region3: #{tpu_custom_call.1} parent=1 // pred_check_branch
      %21 = sbr.rel (0) target = $region5
    $region4: #{tpu_custom_call.1} parent=1 // pred_region
      _
    $region5: #{tpu_custom_call.1} parent=1 // pred_fallthru
      _
    // Predicated region
    $region6: #{tpu_custom_call.1} parent=1 // pred_check
      _
    $region7: #{tpu_custom_call.1} parent=1 // pred_check_branch
      %23 = sbr.rel (0) target = $region9
    $region8: #{tpu_custom_call.1} parent=1 // pred_region
      %s25 = ssub.s32 128, 128
      %26 = vsyncadd [#allocation3], %s25
      %s28 = sshll.u32 [#allocation2], 4
      %s29 = int_to_ptr.vmem [resolvable:$true] %s28
      %31 = dma.hbm_to_vmem [thread:$0]  %s1, 128, %s29, [#allocation3]
    $region9: #{tpu_custom_call.1} parent=1 // pred_fallthru
      _
    // Predicated region
    $region10: #{tpu_custom_call.1} parent=1 // pred_check
      _
    $region11: #{tpu_custom_call.1} parent=1 // pred_check_branch
      %33 = sbr.rel (0) target = $region13
    $region12: #{tpu_custom_call.1} parent=1 // pred_region
      _
    $region13: #{tpu_custom_call.1} parent=1 // pred_fallthru
      _
    // Predicated region
    $region14: #{tpu_custom_call.1} parent=1 // pred_check
      _
    $region15: #{tpu_custom_call.1} parent=1 // pred_check_branch
      %35 = sbr.rel (0) target = $region17
    $region16: #{tpu_custom_call.1} parent=1 // pred_region
      _
    $region17: #{tpu_custom_call.1} parent=1 // pred_fallthru
      _
    // Predicated region
    $region18: #{tpu_custom_call.1} parent=1 // pred_check
      _
    $region19: #{tpu_custom_call.1} parent=1 // pred_check_branch
      %37 = sbr.rel (0) target = $region21
    $region20: #{tpu_custom_call.1} parent=1 // pred_region
      %s39 = ssub.s32 256, 256
      %40 = vsyncadd [#allocation6], %s39
      %s41 = sshll.u32 [#allocation5], 4
      %s42 = int_to_ptr.vmem [resolvable:$true] %s41
      %47 = dma.hbm_to_vmem [thread:$0]  %s4, 256, %s42, [#allocation6], 128, 128, 8
    $region21: #{tpu_custom_call.1} parent=1 // pred_fallthru
      _
    // Predicated region
    $region22: #{tpu_custom_call.1} parent=1 // pred_check
      _
    $region23: #{tpu_custom_call.1} parent=1 // pred_check_branch
      %49 = sbr.rel (0) target = $region25
    $region24: #{tpu_custom_call.1} parent=1 // pred_region
      %s51 = ssub.s32 128, 128
      %52 = vsyncadd [#allocation6], %s51
      %s54 = sshll.u32 [#allocation7], 4
      %s55 = int_to_ptr.vmem [resolvable:$true] %s54
      %57 = dma.hbm_to_vmem [thread:$0]  %s5, 128, %s55, [#allocation6]
    $region25: #{tpu_custom_call.1} parent=1 // pred_fallthru
      _
    // Predicated region
    $region26: #{tpu_custom_call.1} parent=1 // pred_check
      _
    $region27: #{tpu_custom_call.1} parent=1 // pred_check_branch
      %59 = sbr.rel (0) target = $region29
    $region28: #{tpu_custom_call.1} parent=1 // pred_region
      _
    $region29: #{tpu_custom_call.1} parent=1 // pred_fallthru
      _
    // Predicated region
    $region30: #{tpu_custom_call.1} parent=1 // pred_check
      _
    $region31: #{tpu_custom_call.1} parent=1 // pred_check_branch
      %61 = sbr.rel (0) target = $region33
    $region32: #{tpu_custom_call.1} parent=1 // pred_region
      _
    $region33: #{tpu_custom_call.1} parent=1 // pred_fallthru
      _
    // Predicated region
    $region34: #{tpu_custom_call.1} parent=1 // pred_check
      _
    $region35: #{tpu_custom_call.1} parent=1 // pred_check_branch
      %63 = sbr.rel (0) target = $region37
    $region36: #{tpu_custom_call.1} parent=1 // pred_region
      %s65 = ssub.s32 16, 16
      %66 = vsyncadd [#allocation9], %s65
      %s68 = sshll.u32 [#allocation8], 4
      %s69 = int_to_ptr.vmem [resolvable:$true] %s68
      %71 = dma.hbm_to_vmem [thread:$0]  %s8, 16, %s69, [#allocation9]
    $region37: #{tpu_custom_call.1} parent=1 // pred_fallthru
      _
    // Predicated region
    $region38: #{tpu_custom_call.1} parent=1 // pred_check
      _
    $region39: #{tpu_custom_call.1} parent=1 // pred_check_branch
      %73 = sbr.rel (0) target = $region41
    $region40: #{tpu_custom_call.1} parent=1 // pred_region
      _
    $region41: #{tpu_custom_call.1} parent=1 // pred_fallthru
      _
    // Predicated region
    $region42: #{tpu_custom_call.1} parent=1 // pred_check
      _
    $region43: #{tpu_custom_call.1} parent=1 // pred_check_branch
      %75 = sbr.rel (0) target = $region45
    $region44: #{tpu_custom_call.1} parent=1 // pred_region
      _
    $region45: #{tpu_custom_call.1} parent=1 // pred_fallthru
      _
    // Predicated region
    $region46: #{tpu_custom_call.1} parent=1 // pred_check
      _
    $region47: #{tpu_custom_call.1} parent=1 // pred_check_branch
      %77 = sbr.rel (0) target = $region49
    $region48: #{tpu_custom_call.1} parent=1 // pred_region
      %78 = dma.done [#allocation3], 128
    $region49: #{tpu_custom_call.1} parent=1 // pred_fallthru
      _
    // Predicated region
    $region50: #{tpu_custom_call.1} parent=1 // pred_check
      _
    $region51: #{tpu_custom_call.1} parent=1 // pred_check_branch
      %80 = sbr.rel (0) target = $region53
    $region52: #{tpu_custom_call.1} parent=1 // pred_region
      %81 = dma.done [#allocation6], 256
    $region53: #{tpu_custom_call.1} parent=1 // pred_fallthru
      _
    // Predicated region
    $region54: #{tpu_custom_call.1} parent=1 // pred_check
      _
    $region55: #{tpu_custom_call.1} parent=1 // pred_check_branch
      %83 = sbr.rel (0) target = $region57
    $region56: #{tpu_custom_call.1} parent=1 // pred_region
      %84 = dma.done [#allocation6], 128
    $region57: #{tpu_custom_call.1} parent=1 // pred_fallthru
      _
    // Predicated region
    $region58: #{tpu_custom_call.1} parent=1 // pred_check
      _
    $region59: #{tpu_custom_call.1} parent=1 // pred_check_branch
      %86 = sbr.rel (0) target = $region61
    $region60: #{tpu_custom_call.1} parent=1 // pred_region
      %87 = dma.done [#allocation9], 16
    $region61: #{tpu_custom_call.1} parent=1 // pred_fallthru
      _
    %v88 = vld [vmem:[%s0] sm:$0xff]
    %v89 = vld [vmem:[#allocation2] sm:$0xff]
    %v90 = vld [vmem:[#allocation5] sm:$0xff]
    %v91 = vld [vmem:[#allocation5 + $0x8] sm:$0xff]
    %v92 = vld [vmem:[#allocation7] sm:$0xff]
    %vm93 = vcmask 64512
    %v95 = vsel %vm93, %v89, 0
    %97 = vmatprep.subr.mxu0 0.0
    %98 = vmatpush1.msra.mxu0 0.0
    %99 = vmatprep.subr.mxu0 0.0
    %100 = vmatpush1.msra.mxu0 0.0
    %101 = vmatprep.subr.mxu0 0.0
    %102 = vmatpush1.msra.mxu0 0.0
    %103 = vmatprep.subr.mxu0 0.0
    %104 = vmatpush1.msra.mxu0 0.0
    %105 = vmatprep.subr.mxu0 0.0
    %106 = vmatpush1.msra.mxu0 0.0
    %107 = vmatprep.subr.mxu0 0.0
    %108 = vmatpush1.msra.mxu0 0.0
    %109 = vmatprep.subr.mxu0 0.0
    %110 = vmatpush1.msra.mxu0 0.0
    %111 = vmatprep.subr.mxu0 0.0
    %112 = vmatpush1.msra.mxu0 0.0
    %113 = vmatprep.subr.mxu0 0.0
    %114 = vmatpush1.msra.mxu0 0.0
    %115 = vmatprep.subr.mxu0 0.0
    %116 = vmatpush1.msra.mxu0 0.0
    %117 = vmatprep.subr.mxu0 0.0
    %118 = vmatpush1.msra.mxu0 0.0
    %119 = vmatprep.subr.mxu0 0.0
    %120 = vmatpush1.msra.mxu0 0.0
    %121 = vmatprep.subr.mxu0 0.0
    %122 = vmatpush1.msra.mxu0 0.0
    %123 = vmatprep.subr.mxu0 0.0
    %124 = vmatpush1.msra.mxu0 0.0
    %125 = vmatprep.subr.mxu0 0.0
    %126 = vmatpush1.msra.mxu0 0.0
    %127 = vmatprep.subr.mxu0 0.0
    %128 = vmatpush1.msra.mxu0 %v92
    %129 = vmatprep.subr.mxu0 0.0
    %130 = vmatpush2.msra.mxu0 0.0
    %131 = vmatprep.subr.mxu0 0.0
    %132 = vmatpush2.msra.mxu0 0.0
    %133 = vmatprep.subr.mxu0 0.0
    %134 = vmatpush2.msra.mxu0 0.0
    %135 = vmatprep.subr.mxu0 0.0
    %136 = vmatpush2.msra.mxu0 0.0
    %137 = vmatprep.subr.mxu0 0.0
    %138 = vmatpush2.msra.mxu0 0.0
    %139 = vmatprep.subr.mxu0 0.0
    %140 = vmatpush2.msra.mxu0 0.0
    %141 = vmatprep.subr.mxu0 0.0
    %142 = vmatpush2.msra.mxu0 0.0
    %143 = vmatprep.subr.mxu0 0.0
    %144 = vmatpush2.msra.mxu0 0.0
    %145 = vmatprep.subr.mxu0 0.0
    %146 = vmatpush2.msra.mxu0 0.0
    %147 = vmatprep.subr.mxu0 0.0
    %148 = vmatpush2.msra.mxu0 0.0
    %149 = vmatprep.subr.mxu0 0.0
    %150 = vmatpush2.msra.mxu0 0.0
    %151 = vmatprep.subr.mxu0 0.0
    %152 = vmatpush2.msra.mxu0 0.0
    %153 = vmatprep.subr.mxu0 0.0
    %154 = vmatpush2.msra.mxu0 0.0
    %155 = vmatprep.subr.mxu0 0.0
    %156 = vmatpush2.msra.mxu0 0.0
    %157 = vmatprep.subr.mxu0 0.0
    %158 = vmatpush2.msra.mxu0 0.0
    %159 = vmatprep.subr.mxu0 0.0
    %160 = vmatpush2.msra.mxu0 0.0
    %161 = vmatprep.mubr.f32.mxu0 0.0
    %162 = vmatmul.mubr.f32.gmra.mxu0 %v95
    %v163 = vpop.f32.mrf.mxu0
    %v164 = vadd.f32 0.0, %v163
    %v165 = vpop.f32.mrf.mxu0
    %166 = vdwg.mxu0
    %vm167 = vcmask 130048
    %v169 = vsel %vm167, %v88, 0
    %171 = vmatprep.subr.mxu0 0.0
    %172 = vmatpush1.msra.mxu0 0.0
    %173 = vmatprep.subr.mxu0 0.0
    %174 = vmatpush1.msra.mxu0 0.0
    %175 = vmatprep.subr.mxu0 0.0
    %176 = vmatpush1.msra.mxu0 0.0
    %177 = vmatprep.subr.mxu0 0.0
    %178 = vmatpush1.msra.mxu0 0.0
    %179 = vmatprep.subr.mxu0 0.0
    %180 = vmatpush1.msra.mxu0 0.0
    %181 = vmatprep.subr.mxu0 0.0
    %182 = vmatpush1.msra.mxu0 0.0
    %183 = vmatprep.subr.mxu0 0.0
    %184 = vmatpush1.msra.mxu0 0.0
    %185 = vmatprep.subr.mxu0 0.0
    %186 = vmatpush1.msra.mxu0 0.0
    %187 = vmatprep.subr.mxu0 0.0
    %188 = vmatpush1.msra.mxu0 0.0
    %189 = vmatprep.subr.mxu0 0.0
    %190 = vmatpush1.msra.mxu0 0.0
    %191 = vmatprep.subr.mxu0 0.0
    %192 = vmatpush1.msra.mxu0 0.0
    %193 = vmatprep.subr.mxu0 0.0
    %194 = vmatpush1.msra.mxu0 0.0
    %195 = vmatprep.subr.mxu0 0.0
    %196 = vmatpush1.msra.mxu0 0.0
    %197 = vmatprep.subr.mxu0 0.0
    %198 = vmatpush1.msra.mxu0 0.0
    %199 = vmatprep.subr.mxu0 0.0
    %200 = vmatpush1.msra.mxu0 %v91
    %201 = vmatprep.subr.mxu0 0.0
    %202 = vmatpush1.msra.mxu0 %v90
    %203 = vmatprep.subr.mxu0 0.0
    %204 = vmatpush2.msra.mxu0 0.0
    %205 = vmatprep.subr.mxu0 0.0
    %206 = vmatpush2.msra.mxu0 0.0
    %207 = vmatprep.subr.mxu0 0.0
    %208 = vmatpush2.msra.mxu0 0.0
    %209 = vmatprep.subr.mxu0 0.0
    %210 = vmatpush2.msra.mxu0 0.0
    %211 = vmatprep.subr.mxu0 0.0
    %212 = vmatpush2.msra.mxu0 0.0
    %213 = vmatprep.subr.mxu0 0.0
    %214 = vmatpush2.msra.mxu0 0.0
    %215 = vmatprep.subr.mxu0 0.0
    %216 = vmatpush2.msra.mxu0 0.0
    %217 = vmatprep.subr.mxu0 0.0
    %218 = vmatpush2.msra.mxu0 0.0
    %219 = vmatprep.subr.mxu0 0.0
    %220 = vmatpush2.msra.mxu0 0.0
    %221 = vmatprep.subr.mxu0 0.0
    %222 = vmatpush2.msra.mxu0 0.0
    %223 = vmatprep.subr.mxu0 0.0
    %224 = vmatpush2.msra.mxu0 0.0
    %225 = vmatprep.subr.mxu0 0.0
    %226 = vmatpush2.msra.mxu0 0.0
    %227 = vmatprep.subr.mxu0 0.0
    %228 = vmatpush2.msra.mxu0 0.0
    %229 = vmatprep.subr.mxu0 0.0
    %230 = vmatpush2.msra.mxu0 0.0
    %231 = vmatprep.subr.mxu0 0.0
    %232 = vmatpush2.msra.mxu0 0.0
    %233 = vmatprep.subr.mxu0 0.0
    %234 = vmatpush2.msra.mxu0 0.0
    %235 = vmatprep.mubr.f32.mxu0 0.0
    %236 = vmatmul.mubr.f32.gmra.mxu0 %v169
    %v237 = vpop.f32.mrf.mxu0
    %v238 = vadd.f32 %v164, %v237
    %v239 = vpop.f32.mrf.mxu0
    %240 = vdwg.mxu0
    %v241 = vld [vmem:[%s6] sm:$0x1]
    %v243 = vlaneseq
    %v244 = vshrl.u32 %v243, 7
    %v245 = vsub.s32 0, %v244
    %v246 = vrot.slane %v241, %v245
    %v248 = vadd.f32 %v238, %v246
    %v249 = vld [vmem:[%s2] sm:$0xff]
    %v250 = vlaneseq
    %v251 = vand.u32 %v250, 127
    %252 = vset.pattern.permute.xlu0 0
    %253 = vperm.xlu0 %252, %v249
    %v254 = vpop.permute.xlu0 %253
    %vm255 = vcmp.eq.s32.totalorder %v254, %v251
    %v256 = vsel %vm255, 1, 0
    %v257 = vcvt.s32.f32 %v256
    %v258 = vld [vmem:[%s3] sm:$0xff]
    %v259 = vld [vmem:[%s3 + $0x8] sm:$0xff]
    %v261 = vsel %vm167, %v257, 0
    %263 = vmatprep.subr.mxu0 0.0
    %264 = vmatpush1.msra.mxu0 0.0
    %265 = vmatprep.subr.mxu0 0.0
    %266 = vmatpush1.msra.mxu0 0.0
    %267 = vmatprep.subr.mxu0 0.0
    %268 = vmatpush1.msra.mxu0 0.0
    %269 = vmatprep.subr.mxu0 0.0
    %270 = vmatpush1.msra.mxu0 0.0
    %271 = vmatprep.subr.mxu0 0.0
    %272 = vmatpush1.msra.mxu0 0.0
    %273 = vmatprep.subr.mxu0 0.0
    %274 = vmatpush1.msra.mxu0 0.0
    %275 = vmatprep.subr.mxu0 0.0
    %276 = vmatpush1.msra.mxu0 0.0
    %277 = vmatprep.subr.mxu0 0.0
    %278 = vmatpush1.msra.mxu0 0.0
    %279 = vmatprep.subr.mxu0 0.0
    %280 = vmatpush1.msra.mxu0 0.0
    %281 = vmatprep.subr.mxu0 0.0
    %282 = vmatpush1.msra.mxu0 0.0
    %283 = vmatprep.subr.mxu0 0.0
    %284 = vmatpush1.msra.mxu0 0.0
    %285 = vmatprep.subr.mxu0 0.0
    %286 = vmatpush1.msra.mxu0 0.0
    %287 = vmatprep.subr.mxu0 0.0
    %288 = vmatpush1.msra.mxu0 0.0
    %289 = vmatprep.subr.mxu0 0.0
    %290 = vmatpush1.msra.mxu0 0.0
    %291 = vmatprep.subr.mxu0 0.0
    %292 = vmatpush1.msra.mxu0 %v259
    %293 = vmatprep.subr.mxu0 0.0
    %294 = vmatpush1.msra.mxu0 %v258
    %295 = vmatprep.subr.mxu0 0.0
    %296 = vmatpush2.msra.mxu0 0.0
    %297 = vmatprep.subr.mxu0 0.0
    %298 = vmatpush2.msra.mxu0 0.0
    %299 = vmatprep.subr.mxu0 0.0
    %300 = vmatpush2.msra.mxu0 0.0
    %301 = vmatprep.subr.mxu0 0.0
    %302 = vmatpush2.msra.mxu0 0.0
    %303 = vmatprep.subr.mxu0 0.0
    %304 = vmatpush2.msra.mxu0 0.0
    %305 = vmatprep.subr.mxu0 0.0
    %306 = vmatpush2.msra.mxu0 0.0
    %307 = vmatprep.subr.mxu0 0.0
    %308 = vmatpush2.msra.mxu0 0.0
    %309 = vmatprep.subr.mxu0 0.0
    %310 = vmatpush2.msra.mxu0 0.0
    %311 = vmatprep.subr.mxu0 0.0
    %312 = vmatpush2.msra.mxu0 0.0
    %313 = vmatprep.subr.mxu0 0.0
    %314 = vmatpush2.msra.mxu0 0.0
    %315 = vmatprep.subr.mxu0 0.0
    %316 = vmatpush2.msra.mxu0 0.0
    %317 = vmatprep.subr.mxu0 0.0
    %318 = vmatpush2.msra.mxu0 0.0
    %319 = vmatprep.subr.mxu0 0.0
    %320 = vmatpush2.msra.mxu0 0.0
    %321 = vmatprep.subr.mxu0 0.0
    %322 = vmatpush2.msra.mxu0 0.0
    %323 = vmatprep.subr.mxu0 0.0
    %324 = vmatpush2.msra.mxu0 0.0
    %325 = vmatprep.subr.mxu0 0.0
    %326 = vmatpush2.msra.mxu0 0.0
    %327 = vmatprep.mubr.f32.mxu0 0.0
    %328 = vmatmul.mubr.f32.gmra.mxu0 %v261
    %v329 = vpop.f32.mrf.mxu0
    %v330 = vadd.f32 0.0, %v329
    %v331 = vpop.f32.mrf.mxu0
    %332 = vdwg.mxu0
    %v333 = vmul.f32 %v248, 0.5
    %v334 = vmul.f32 %v248, 0.70710677
    %v335 = verf.f32.pop %v334
    %v336 = vadd.f32 %v335, 1.0
    %v337 = vmul.f32 %v333, %v336
    %v338 = vadd.f32 %v337, %v330
    %v339 = vld [vmem:[%s7] sm:$0xff]
    %v340 = vld [vmem:[%s7 + $0x8] sm:$0xff]
    %v341 = vld [vmem:[%s7 + $0x10] sm:$0xff]
    %v342 = vld [vmem:[%s7 + $0x18] sm:$0xff]
    %v343 = vld [vmem:[%s7 + $0x20] sm:$0xff]
    %v344 = vld [vmem:[%s7 + $0x28] sm:$0xff]
    %v345 = vld [vmem:[%s7 + $0x30] sm:$0xff]
    %v346 = vld [vmem:[%s7 + $0x38] sm:$0xff]
    %v347 = vld [vmem:[%s7 + $0x40] sm:$0xff]
    %v348 = vld [vmem:[%s7 + $0x48] sm:$0xff]
    %v349 = vld [vmem:[%s7 + $0x50] sm:$0xff]
    %v350 = vld [vmem:[%s7 + $0x58] sm:$0xff]
    %v351 = vld [vmem:[%s7 + $0x60] sm:$0xff]
    %v352 = vld [vmem:[%s7 + $0x68] sm:$0xff]
    %v353 = vld [vmem:[%s7 + $0x70] sm:$0xff]
    %v354 = vld [vmem:[%s7 + $0x78] sm:$0xff]
    %v355 = vld [vmem:[#allocation8] sm:$0x1]
    %v357 = vlaneseq
    %v358 = vshrl.u32 %v357, 7
    %v359 = vsub.s32 0, %v358
    %v360 = vrot.slane %v355, %v359
    %362 = vmatprep.subr.mxu0 0.0
    %363 = vmatpush1.msra.mxu0 %v354
    %364 = vmatprep.subr.mxu0 0.0
    %365 = vmatpush1.msra.mxu0 %v353
    %366 = vmatprep.subr.mxu0 0.0
    %367 = vmatpush1.msra.mxu0 %v352
    %368 = vmatprep.subr.mxu0 0.0
    %369 = vmatpush1.msra.mxu0 %v351
    %370 = vmatprep.subr.mxu0 0.0
    %371 = vmatpush1.msra.mxu0 %v350
    %372 = vmatprep.subr.mxu0 0.0
    %373 = vmatpush1.msra.mxu0 %v349
    %374 = vmatprep.subr.mxu0 0.0
    %375 = vmatpush1.msra.mxu0 %v348
    %376 = vmatprep.subr.mxu0 0.0
    %377 = vmatpush1.msra.mxu0 %v347
    %378 = vmatprep.subr.mxu0 0.0
    %379 = vmatpush1.msra.mxu0 %v346
    %380 = vmatprep.subr.mxu0 0.0
    %381 = vmatpush1.msra.mxu0 %v345
    %382 = vmatprep.subr.mxu0 0.0
    %383 = vmatpush1.msra.mxu0 %v344
    %384 = vmatprep.subr.mxu0 0.0
    %385 = vmatpush1.msra.mxu0 %v343
    %386 = vmatprep.subr.mxu0 0.0
    %387 = vmatpush1.msra.mxu0 %v342
    %388 = vmatprep.subr.mxu0 0.0
    %389 = vmatpush1.msra.mxu0 %v341
    %390 = vmatprep.subr.mxu0 0.0
    %391 = vmatpush1.msra.mxu0 %v340
    %392 = vmatprep.subr.mxu0 0.0
    %393 = vmatpush1.msra.mxu0 %v339
    %394 = vmatprep.subr.mxu0 0.0
    %395 = vmatpush2.msra.mxu0 0.0
    %396 = vmatprep.subr.mxu0 0.0
    %397 = vmatpush2.msra.mxu0 0.0
    %398 = vmatprep.subr.mxu0 0.0
    %399 = vmatpush2.msra.mxu0 0.0
    %400 = vmatprep.subr.mxu0 0.0
    %401 = vmatpush2.msra.mxu0 0.0
    %402 = vmatprep.subr.mxu0 0.0
    %403 = vmatpush2.msra.mxu0 0.0
    %404 = vmatprep.subr.mxu0 0.0
    %405 = vmatpush2.msra.mxu0 0.0
    %406 = vmatprep.subr.mxu0 0.0
    %407 = vmatpush2.msra.mxu0 0.0
    %408 = vmatprep.subr.mxu0 0.0
    %409 = vmatpush2.msra.mxu0 0.0
    %410 = vmatprep.subr.mxu0 0.0
    %411 = vmatpush2.msra.mxu0 0.0
    %412 = vmatprep.subr.mxu0 0.0
    %413 = vmatpush2.msra.mxu0 0.0
    %414 = vmatprep.subr.mxu0 0.0
    %415 = vmatpush2.msra.mxu0 0.0
    %416 = vmatprep.subr.mxu0 0.0
    %417 = vmatpush2.msra.mxu0 0.0
    %418 = vmatprep.subr.mxu0 0.0
    %419 = vmatpush2.msra.mxu0 0.0
    %420 = vmatprep.subr.mxu0 0.0
    %421 = vmatpush2.msra.mxu0 0.0
    %422 = vmatprep.subr.mxu0 0.0
    %423 = vmatpush2.msra.mxu0 0.0
    %424 = vmatprep.subr.mxu0 0.0
    %425 = vmatpush2.msra.mxu0 0.0
    %426 = vmatprep.mubr.f32.mxu0 0.0
    %427 = vmatmul.mubr.f32.gmra.mxu0 %v338
    %v428 = vpop.f32.mrf.mxu0
    %v429 = vadd.f32 %v360, %v428
    %v430 = vpop.f32.mrf.mxu0
    %431 = vdwg.mxu0
    %v432 = vmul.f32 %v429, 0.5
    %v433 = vmul.f32 %v429, 0.70710677
    %v434 = verf.f32.pop %v433
    %v435 = vadd.f32 %v434, 1.0
    %v436 = vmul.f32 %v432, %v435
    %v437 = vld [vmem:[%s9] sm:$0xff]
    %v438 = vld [vmem:[%s9 + $0x8] sm:$0xff]
    %v439 = vld [vmem:[%s9 + $0x10] sm:$0xff]
    %v440 = vld [vmem:[%s9 + $0x18] sm:$0xff]
    %v441 = vld [vmem:[%s9 + $0x20] sm:$0xff]
    %v442 = vld [vmem:[%s9 + $0x28] sm:$0xff]
    %v443 = vld [vmem:[%s9 + $0x30] sm:$0xff]
    %v444 = vld [vmem:[%s9 + $0x38] sm:$0xff]
    %v445 = vld [vmem:[%s9 + $0x40] sm:$0xff]
    %v446 = vld [vmem:[%s9 + $0x48] sm:$0xff]
    %v447 = vld [vmem:[%s9 + $0x50] sm:$0xff]
    %v448 = vld [vmem:[%s9 + $0x58] sm:$0xff]
    %v449 = vld [vmem:[%s9 + $0x60] sm:$0xff]
    %v450 = vld [vmem:[%s9 + $0x68] sm:$0xff]
    %v451 = vld [vmem:[%s9 + $0x70] sm:$0xff]
    %v452 = vld [vmem:[%s9 + $0x78] sm:$0xff]
    %v453 = vld [vmem:[%s10] sm:$0x1]
    %v455 = vlaneseq
    %v456 = vshrl.u32 %v455, 7
    %v457 = vsub.s32 0, %v456
    %v458 = vrot.slane %v453, %v457
    %460 = vmatprep.subr.mxu0 0.0
    %461 = vmatpush1.msra.mxu0 %v452
    %462 = vmatprep.subr.mxu0 0.0
    %463 = vmatpush1.msra.mxu0 %v451
    %464 = vmatprep.subr.mxu0 0.0
    %465 = vmatpush1.msra.mxu0 %v450
    %466 = vmatprep.subr.mxu0 0.0
    %467 = vmatpush1.msra.mxu0 %v449
    %468 = vmatprep.subr.mxu0 0.0
    %469 = vmatpush1.msra.mxu0 %v448
    %470 = vmatprep.subr.mxu0 0.0
    %471 = vmatpush1.msra.mxu0 %v447
    %472 = vmatprep.subr.mxu0 0.0
    %473 = vmatpush1.msra.mxu0 %v446
    %474 = vmatprep.subr.mxu0 0.0
    %475 = vmatpush1.msra.mxu0 %v445
    %476 = vmatprep.subr.mxu0 0.0
    %477 = vmatpush1.msra.mxu0 %v444
    %478 = vmatprep.subr.mxu0 0.0
    %479 = vmatpush1.msra.mxu0 %v443
    %480 = vmatprep.subr.mxu0 0.0
    %481 = vmatpush1.msra.mxu0 %v442
    %482 = vmatprep.subr.mxu0 0.0
    %483 = vmatpush1.msra.mxu0 %v441
    %484 = vmatprep.subr.mxu0 0.0
    %485 = vmatpush1.msra.mxu0 %v440
    %486 = vmatprep.subr.mxu0 0.0
    %487 = vmatpush1.msra.mxu0 %v439
    %488 = vmatprep.subr.mxu0 0.0
    %489 = vmatpush1.msra.mxu0 %v438
    %490 = vmatprep.subr.mxu0 0.0
    %491 = vmatpush1.msra.mxu0 %v437
    %492 = vmatprep.subr.mxu0 0.0
    %493 = vmatpush2.msra.mxu0 0.0
    %494 = vmatprep.subr.mxu0 0.0
    %495 = vmatpush2.msra.mxu0 0.0
    %496 = vmatprep.subr.mxu0 0.0
    %497 = vmatpush2.msra.mxu0 0.0
    %498 = vmatprep.subr.mxu0 0.0
    %499 = vmatpush2.msra.mxu0 0.0
    %500 = vmatprep.subr.mxu0 0.0
    %501 = vmatpush2.msra.mxu0 0.0
    %502 = vmatprep.subr.mxu0 0.0
    %503 = vmatpush2.msra.mxu0 0.0
    %504 = vmatprep.subr.mxu0 0.0
    %505 = vmatpush2.msra.mxu0 0.0
    %506 = vmatprep.subr.mxu0 0.0
    %507 = vmatpush2.msra.mxu0 0.0
    %508 = vmatprep.subr.mxu0 0.0
    %509 = vmatpush2.msra.mxu0 0.0
    %510 = vmatprep.subr.mxu0 0.0
    %511 = vmatpush2.msra.mxu0 0.0
    %512 = vmatprep.subr.mxu0 0.0
    %513 = vmatpush2.msra.mxu0 0.0
    %514 = vmatprep.subr.mxu0 0.0
    %515 = vmatpush2.msra.mxu0 0.0
    %516 = vmatprep.subr.mxu0 0.0
    %517 = vmatpush2.msra.mxu0 0.0
    %518 = vmatprep.subr.mxu0 0.0
    %519 = vmatpush2.msra.mxu0 0.0
    %520 = vmatprep.subr.mxu0 0.0
    %521 = vmatpush2.msra.mxu0 0.0
    %522 = vmatprep.subr.mxu0 0.0
    %523 = vmatpush2.msra.mxu0 0.0
    %524 = vmatprep.mubr.f32.mxu0 0.0
    %525 = vmatmul.mubr.f32.gmra.mxu0 %v436
    %v526 = vpop.f32.mrf.mxu0
    %v527 = vadd.f32 %v458, %v526
    %v528 = vpop.f32.mrf.mxu0
    %529 = vdwg.mxu0
    %530 = vst.msk [vmem:[#allocation10] sm:$0xff] %vm167, %v527
    // Predicated region
    $region62: #{tpu_custom_call.1} parent=1 // pred_check
      _
    $region63: #{tpu_custom_call.1} parent=1 // pred_check_branch
      %532 = sbr.rel (0) target = $region65
    $region64: #{tpu_custom_call.1} parent=1 // pred_region
      %s534 = ssub.s32 128, 128
      %535 = vsyncadd [#allocation4], %s534
      %s537 = sshll.u32 [#allocation10], 4
      %s538 = int_to_ptr.vmem [resolvable:$true] %s537
      %540 = dma.vmem_to_hbm [thread:$0]  %s538, 128, %s11, [#allocation4]
    $region65: #{tpu_custom_call.1} parent=1 // pred_fallthru
      _
    // Predicated region
    $region66: #{tpu_custom_call.1} parent=1 // pred_check
      _
    $region67: #{tpu_custom_call.1} parent=1 // pred_check_branch
      %542 = sbr.rel (0) target = $region69
    $region68: #{tpu_custom_call.1} parent=1 // pred_region
      %543 = dma.done [#allocation4], 128
    $region69: #{tpu_custom_call.1} parent=1 // pred_fallthru
      _
    %544 = vsyncpa [#allocation3], 1
    %545 = vsyncpa [#allocation6], 1
    %546 = vsyncpa [#allocation9], 1
    %547 = vsyncpa [#allocation4], 1

</llo_original>
